<compile_context>
chip_gen: v7x
topology: tpu7x:2x2x1
jax: 0.10.0
libtpu: 0.0.40
codegen_flags: <defaults>
</compile_context>

<pallas_src>
import numpy as np
import jax
import jax.numpy as jnp
from jax.experimental import pallas as pl
from jax.experimental.pallas import tpu as pltpu

NUM_FRAMES = 30
_LANES = 128


def _round_up(x, m):
    return (x + m - 1) // m * m


# --------------------------------------------------------------------------------------
# Fused Pallas kernel: loss_ce + class_error + keypoint squared-error sum in one call
# --------------------------------------------------------------------------------------

def _fused_losses_call(logits_t, labels_all, mlogits_t, mlabels,
                       kp_pred, kp_tgt, n_valid, m_valid):
    """Single pallas_call producing (loss_ce, class_error, sq_err_sum).

    Lane-dense layouts:
      logits_t   [C1, N_pad]  classes on sublanes, rows on lanes
      labels_all [1,  N_pad]  int32, -1 marks lane padding
      mlogits_t  [C1, M_pad]  matched rows only
      mlabels    [1,  M_pad]  int32, -1 marks lane padding
      kp_pred / kp_tgt  [R, 128]  zero-padded flattened keypoints (exact for sum-sq)
    """

    def kernel(lg_ref, lb_ref, mlg_ref, mlb_ref, kp_ref, kt_ref, out_ref):
        # ---- mean cross-entropy over every (frame, batch, query) row ------------
        x = lg_ref[...].astype(jnp.float32)                    # [C1, Np]
        lbl = lb_ref[...]                                       # [1,  Np] int32
        c1, npad = x.shape
        mx = jnp.max(x, axis=0, keepdims=True)                  # sublane reduce (9)
        z = x - mx
        lse = jnp.log(jnp.sum(jnp.exp(z), axis=0, keepdims=True))
        cidx = jax.lax.broadcasted_iota(jnp.int32, (c1, npad), 0)
        picked = jnp.sum(jnp.where(cidx == lbl, z, 0.0), axis=0, keepdims=True)
        valid = (lbl >= 0).astype(jnp.float32)                  # mask lane padding
        out_ref[0, 0] = jnp.sum((lse - picked) * valid) * (1.0 / n_valid)

        # ---- top-1 class error over matched rows (DETR `accuracy`) --------------
        xm = mlg_ref[...].astype(jnp.float32)                   # [C1, Mp]
        mlbl = mlb_ref[...]                                      # [1,  Mp] int32
        c1m, mpad = xm.shape
        mmx = jnp.max(xm, axis=0, keepdims=True)
        midx = jax.lax.broadcasted_iota(jnp.int32, (c1m, mpad), 0)
        argmax = jnp.min(jnp.where(xm == mmx, midx, c1m), axis=0, keepdims=True)
        correct = jnp.where(argmax == mlbl, 1.0, 0.0)            # pad (-1) never matches
        out_ref[0, 1] = 100.0 - jnp.sum(correct) * (100.0 / m_valid)

        # ---- sum of squared keypoint errors --------------------------------------
        d = kp_ref[...].astype(jnp.float32) - kt_ref[...].astype(jnp.float32)
        out_ref[0, 2] = jnp.sum(d * d)
        out_ref[0, 3] = 0.0

    out = pl.pallas_call(
        kernel,
        out_shape=jax.ShapeDtypeStruct((1, 4), jnp.float32),
        in_specs=[pl.BlockSpec(memory_space=pltpu.MemorySpace.VMEM)] * 6,
        out_specs=pl.BlockSpec(memory_space=pltpu.MemorySpace.SMEM),
    )(logits_t, labels_all, mlogits_t, mlabels, kp_pred, kp_tgt)
    return out[0, 0], out[0, 1], out[0, 2]


# --------------------------------------------------------------------------------------
# Layout helpers (wrapper-side plumbing, no compute hoisting)
# --------------------------------------------------------------------------------------

def _lane_pad_transpose(rows_2d, labels_1d):
    """[N, C] logits + [N] labels -> lane-dense ([C, N_pad], [1, N_pad] int32, pad=-1)."""
    n, _c = rows_2d.shape
    npad = _round_up(max(n, 1), _LANES)
    lg = jnp.transpose(rows_2d)
    lg = jnp.pad(lg, ((0, 0), (0, npad - n)))
    lb = jnp.pad(labels_1d.astype(jnp.int32), (0, npad - n), constant_values=-1)
    return lg, lb.reshape(1, npad)


def _slab_128(x_2d):
    """Flatten and zero-pad to a dense [R, 128] slab (exact for a sum of squares)."""
    flat = x_2d.reshape(-1)
    total = _round_up(max(flat.shape[0], 1), 8 * _LANES)
    flat = jnp.pad(flat, (0, total - flat.shape[0]))
    return flat.reshape(-1, _LANES)


# --------------------------------------------------------------------------------------
# SetCriterion (JAX port; all heavy reductions run in the fused Pallas kernel)
# --------------------------------------------------------------------------------------

def identity_matcher(outputs, targets, frame):
    # TODO(synk): Hungarian matching (scipy.optimize.linear_sum_assignment) has no clean
    # Pallas equivalent; a deterministic identity matching (target j -> query j) is used.
    return [(list(range(t['kpt'].shape[1])), list(range(t['kpt'].shape[1])))
            for t in targets]


class SetCriterion:
    def __init__(self, num_logitsclass, matcher, weight_dict, logits_eos_coef,
                 losses, num_classes=8):
        self.num_logitsclass = num_logitsclass
        self.matcher = matcher
        self.weight_dict = weight_dict
        self.logits_eos_coef = logits_eos_coef
        self.losses = losses
        self.num_classes = num_classes
        # parity with the torch buffer; the reference forward() never passes it to
        # F.cross_entropy, so it is intentionally unused here as well.
        self.empty_weight_logits = jnp.ones(num_logitsclass + 1,
                                            jnp.float32).at[0].set(logits_eos_coef)
        self.mpjpe_list = []
        self.mpjdle_list = []

    # ---- vectorized gather of matched rows ----------------------------------------

    def _gather_matched(self, outputs, targets, indices_list):
        src_logits = outputs['pred_logits']               # [F, B, Q, C1]
        pred_kpt = outputs['pred_kpt']                    # [F, B, Q, D]
        F_, B, Q, C1 = src_logits.shape
        D = pred_kpt.shape[-1]

        # static index arrays (the matcher returns plain python index lists)
        src_idx = np.asarray([[np.asarray(indices_list[f][b][0]) for b in range(B)]
                              for f in range(F_)], dtype=np.int32)   # [F, B, m]
        tgt_idx = np.asarray([[np.asarray(indices_list[f][b][1]) for b in range(B)]
                              for f in range(F_)], dtype=np.int32)
        m = src_idx.shape[-1]
        # TODO(synk): a real Hungarian matcher yields data-dependent match counts per
        # (frame, batch); that does not jit with static slabs and is not handled here.

        kpt_cls_all = jnp.stack([t['kpt_cls'] for t in targets], axis=1)  # [F, B, m_t]
        kpt_all = jnp.stack([t['kpt'] for t in targets], axis=1)          # [F, B, m_t, D]

        ident_ar = np.broadcast_to(np.arange(m, dtype=np.int32), src_idx.shape)
        is_identity = (np.array_equal(src_idx, ident_ar)
                       and np.array_equal(tgt_idx, ident_ar)
                       and kpt_cls_all.shape[2] == m)

        if is_identity:
            # identity matching: everything is a static slice -> no gathers/scatters
            target_classes_o = kpt_cls_all                                # [F, B, m]
            src_class = src_logits[:, :, :m, :]                           # [F, B, m, C1]
            src_kpt = pred_kpt[:, :, :m, :]
            target_kpt = kpt_all
            target_classes = jnp.zeros((F_, B, Q), jnp.int32)
            target_classes = target_classes.at[:, :, :m].set(target_classes_o)
        else:
            si = jnp.asarray(src_idx)
            ti = jnp.asarray(tgt_idx)
            target_classes_o = jnp.take_along_axis(kpt_cls_all, ti, axis=2)
            target_kpt = jnp.take_along_axis(kpt_all, ti[..., None], axis=2)
            src_class = jnp.take_along_axis(src_logits, si[..., None], axis=2)
            src_kpt = jnp.take_along_axis(pred_kpt, si[..., None], axis=2)
            fg = jnp.arange(F_)[:, None, None]
            bg = jnp.arange(B)[None, :, None]
            target_classes = jnp.zeros((F_, B, Q), jnp.int32)
            target_classes = target_classes.at[fg, bg, si].set(target_classes_o)

        return {
            'target_classes': target_classes,                     # [F, B, Q]
            'target_classes_o': target_classes_o.reshape(-1),     # [M]
            'src_class': src_class.reshape(-1, C1),               # [M, C1]
            'src_kpt': src_kpt.reshape(-1, D),                    # [M, D]
            'target_kpt': target_kpt.reshape(-1, D),              # [M, D]
        }

    # ---- forward --------------------------------------------------------------------

    def forward(self, outputs, targets):
        outputs_without_aux = {k: v for k, v in outputs.items() if k != 'aux_outputs'}
        indices_list = [self.matcher(outputs_without_aux, targets, i)
                        for i in range(NUM_FRAMES)]

        num_boxes = 0
        for t in targets:
            f, n, _ = t['kpt'].shape
            num_boxes += f * n
        num_boxes = max(float(num_boxes) / 1.0, 1.0)          # get_world_size() == 1

        src_logits = outputs['pred_logits']
        F_, B, Q, C1 = src_logits.shape
        g = self._gather_matched(outputs, targets, indices_list)

        # lane-dense slabs for the fused kernel
        lg_t, lb = _lane_pad_transpose(src_logits.reshape(-1, C1),
                                       g['target_classes'].reshape(-1))
        mlg_t, mlb = _lane_pad_transpose(g['src_class'], g['target_classes_o'])
        kp_pred = _slab_128(g['src_kpt'])
        kp_tgt = _slab_128(g['target_kpt'])

        loss_ce, class_error, sq_sum = _fused_losses_call(
            lg_t, lb, mlg_t, mlb, kp_pred, kp_tgt,
            n_valid=F_ * B * Q, m_valid=g['src_class'].shape[0])

        fused = {'loss_ce': loss_ce,
                 'class_error': class_error,
                 'loss_kpt': sq_sum / num_boxes}
        # TODO(synk): per-finger MPJPE/MPJDLE logging side effects (python-list appends
        # inside the torch loss_kpt, not returned by forward) are not reproduced.

        losses = {}
        for loss in self.losses:
            losses.update(self.get_loss(loss, fused))
        return losses

    def get_loss(self, loss, fused, log=True):
        loss_map = {
            'cls': lambda: ({'loss_ce': fused['loss_ce'],
                             'class_error': fused['class_error']} if log
                            else {'loss_ce': fused['loss_ce']}),
            'kpt': lambda: {'loss_kpt': fused['loss_kpt']},
        }
        assert loss in loss_map, f'do you really want to compute {loss} loss?'
        return loss_map[loss]()


# --------------------------------------------------------------------------------------
# demo / smoke test
# --------------------------------------------------------------------------------------

if __name__ == "__main__":
    key = jax.random.PRNGKey(0)
    F_, B, Q, n_t = NUM_FRAMES, 2, 8, 4
    num_logitsclass = 8
    C1 = num_logitsclass + 1
    D = 63                                                   # 21 joints x 3 coords

    k_logits, k_kpt, k_rest = jax.random.split(key, 3)
    outputs = {
        'pred_logits': jax.random.normal(k_logits, (F_, B, Q, C1), jnp.float32),
        'pred_kpt': 0.1 * jax.random.normal(k_kpt, (F_, B, Q, D), jnp.float32),
    }

    targets = []
    for b in range(B):
        k_a, k_b, k_rest = jax.random.split(k_rest, 3)
        targets.append({
            'kpt': 0.1 * jax.random.normal(k_a, (F_, n_t, D), jnp.float32),
            'kpt_cls': jax.random.randint(k_b, (F_, n_t), 1, C1, dtype=jnp.int32),
        })

    criterion = SetCriterion(
        num_logitsclass=num_logitsclass,
        matcher=identity_matcher,
        weight_dict={'loss_ce': 1.0, 'loss_kpt': 1.0},
        logits_eos_coef=0.1,
        losses=['cls', 'kpt'],
        num_classes=8,
    )

    losses = criterion.forward(outputs, targets)
    for v in losses.values():
        jax.block_until_ready(v)

    # ----- plain-JAX references --------------------------------------------------
    logits_flat = outputs['pred_logits'].reshape(-1, C1)
    tc = jnp.zeros((F_, B, Q), jnp.int32)
    tc = tc.at[:, :, :n_t].set(jnp.stack([t['kpt_cls'] for t in targets], axis=1))
    ref_ce = jnp.mean(
        -jax.nn.log_softmax(logits_flat, -1)[jnp.arange(F_ * B * Q), tc.reshape(-1)])
    assert abs(float(losses['loss_ce']) - float(ref_ce)) < 1e-4

    m_logits = outputs['pred_logits'][:, :, :n_t, :].reshape(-1, C1)
    m_labels = jnp.stack([t['kpt_cls'] for t in targets], axis=1).reshape(-1)
    ref_err = 100.0 - 100.0 * jnp.mean(
        (jnp.argmax(m_logits, -1) == m_labels).astype(jnp.float32))
    assert abs(float(losses['class_error']) - float(ref_err)) < 1e-3

    src_kpt = outputs['pred_kpt'][:, :, :n_t, :].reshape(-1, D)
    tgt_kpt = jnp.stack([t['kpt'] for t in targets], axis=1).reshape(-1, D)
    num_boxes = float(F_ * n_t * B)
    ref_kpt = jnp.sum((src_kpt - tgt_kpt) ** 2) / num_boxes
    assert abs(float(losses['loss_kpt']) - float(ref_kpt)) < 1e-4 * max(1.0, float(ref_kpt))

    print("KERNEL_OK")
</pallas_src>

<mosaic_0001>
module attributes {stable_mosaic.version = 11 : i64} {
  func.func @kernel(%arg0: memref<9x512xf32, #tpu.memory_space<vmem>>, %arg1: memref<1x512xi32, #tpu.memory_space<vmem>>, %arg2: memref<9x256xf32, #tpu.memory_space<vmem>>, %arg3: memref<1x256xi32, #tpu.memory_space<vmem>>, %arg4: memref<120x128xf32, #tpu.memory_space<vmem>>, %arg5: memref<120x128xf32, #tpu.memory_space<vmem>>, %arg6: memref<1x4xf32, #tpu.memory_space<smem>>) attributes {dimension_semantics = [], scalar_prefetch = 0 : i64, scratch_operands = 0 : i64, tpu.core_type = #tpu.core_type<tc>} {
    %c0 = arith.constant 0 : index
    %c0_0 = arith.constant 0 : index
    %0 = vector.load %arg0[%c0, %c0_0] : memref<9x512xf32, #tpu.memory_space<vmem>>, vector<9x512xf32>
    %c0_1 = arith.constant 0 : index
    %c0_2 = arith.constant 0 : index
    %1 = vector.load %arg1[%c0_1, %c0_2] : memref<1x512xi32, #tpu.memory_space<vmem>>, vector<1x512xi32>
    %cst = arith.constant dense<0xFF800000> : vector<512xf32>
    %2 = vector.multi_reduction <maximumf>, %0, %cst [0] : vector<9x512xf32> to vector<512xf32>
    %3 = vector.shape_cast %2 : vector<512xf32> to vector<1x512xf32>
    %4 = vector.broadcast %3 : vector<1x512xf32> to vector<9x512xf32>
    %5 = arith.subf %0, %4 : vector<9x512xf32>
    %6 = math.exp %5 : vector<9x512xf32>
    %cst_3 = arith.constant dense<0.000000e+00> : vector<512xf32>
    %7 = vector.multi_reduction <add>, %6, %cst_3 [0] : vector<9x512xf32> to vector<512xf32>
    %8 = vector.shape_cast %7 : vector<512xf32> to vector<1x512xf32>
    %9 = math.log %8 : vector<1x512xf32>
    %10 = tpu.iota {dimensions = array<i32: 0>} : vector<9x512xi32>
    %11 = vector.broadcast %1 : vector<1x512xi32> to vector<9x512xi32>
    %12 = arith.cmpi eq, %10, %11 : vector<9x512xi32>
    %cst_4 = arith.constant 0.000000e+00 : f32
    %13 = vector.broadcast %cst_4 : f32 to vector<9x512xf32>
    %14 = arith.select %12, %5, %13 : vector<9x512xi1>, vector<9x512xf32>
    %cst_5 = arith.constant dense<0.000000e+00> : vector<512xf32>
    %15 = vector.multi_reduction <add>, %14, %cst_5 [0] : vector<9x512xf32> to vector<512xf32>
    %16 = vector.shape_cast %15 : vector<512xf32> to vector<1x512xf32>
    %c0_i32 = arith.constant 0 : i32
    %17 = vector.broadcast %c0_i32 : i32 to vector<1x512xi32>
    %18 = arith.cmpi sge, %1, %17 : vector<1x512xi32>
    %19 = arith.extui %18 : vector<1x512xi1> to vector<1x512xi32>
    %20 = arith.sitofp %19 : vector<1x512xi32> to vector<1x512xf32>
    %21 = arith.subf %9, %16 : vector<1x512xf32>
    %22 = arith.mulf %21, %20 : vector<1x512xf32>
    %23 = vector.shape_cast %22 : vector<1x512xf32> to vector<1x1x512xf32>
    %cst_6 = arith.constant dense<0.000000e+00> : vector<1xf32>
    %24 = vector.multi_reduction <add>, %23, %cst_6 [1, 2] : vector<1x1x512xf32> to vector<1xf32>
    %25 = vector.shape_cast %24 : vector<1xf32> to vector<1x1x1xf32>
    %26 = vector.extract %25[0, 0, 0] : f32 from vector<1x1x1xf32>
    %cst_7 = arith.constant 0.00208333344 : f32
    %27 = arith.mulf %26, %cst_7 : f32
    %c0_8 = arith.constant 0 : index
    %c0_9 = arith.constant 0 : index
    %28 = memref.load %arg6[%c0_8, %c0_9] : memref<1x4xf32, #tpu.memory_space<smem>>
    memref.store %27, %arg6[%c0_8, %c0_9] : memref<1x4xf32, #tpu.memory_space<smem>>
    %c0_10 = arith.constant 0 : index
    %c0_11 = arith.constant 0 : index
    %29 = vector.load %arg2[%c0_10, %c0_11] : memref<9x256xf32, #tpu.memory_space<vmem>>, vector<9x256xf32>
    %c0_12 = arith.constant 0 : index
    %c0_13 = arith.constant 0 : index
    %30 = vector.load %arg3[%c0_12, %c0_13] : memref<1x256xi32, #tpu.memory_space<vmem>>, vector<1x256xi32>
    %cst_14 = arith.constant dense<0xFF800000> : vector<256xf32>
    %31 = vector.multi_reduction <maximumf>, %29, %cst_14 [0] : vector<9x256xf32> to vector<256xf32>
    %32 = vector.shape_cast %31 : vector<256xf32> to vector<1x256xf32>
    %33 = tpu.iota {dimensions = array<i32: 0>} : vector<9x256xi32>
    %34 = vector.broadcast %32 : vector<1x256xf32> to vector<9x256xf32>
    %35 = arith.cmpf oeq, %29, %34 : vector<9x256xf32>
    %c9_i32 = arith.constant 9 : i32
    %36 = vector.broadcast %c9_i32 : i32 to vector<9x256xi32>
    %37 = arith.select %35, %33, %36 : vector<9x256xi1>, vector<9x256xi32>
    %cst_15 = arith.constant dense<2147483647> : vector<256xi32>
    %38 = vector.multi_reduction <minsi>, %37, %cst_15 [0] : vector<9x256xi32> to vector<256xi32>
    %39 = vector.shape_cast %38 : vector<256xi32> to vector<1x256xi32>
    %40 = arith.cmpi eq, %39, %30 : vector<1x256xi32>
    %cst_16 = arith.constant 1.000000e+00 : f32
    %cst_17 = arith.constant 0.000000e+00 : f32
    %41 = vector.broadcast %cst_16 : f32 to vector<1x256xf32>
    %42 = vector.broadcast %cst_17 : f32 to vector<1x256xf32>
    %43 = arith.select %40, %41, %42 : vector<1x256xi1>, vector<1x256xf32>
    %44 = vector.shape_cast %43 : vector<1x256xf32> to vector<1x1x256xf32>
    %cst_18 = arith.constant dense<0.000000e+00> : vector<1xf32>
    %45 = vector.multi_reduction <add>, %44, %cst_18 [1, 2] : vector<1x1x256xf32> to vector<1xf32>
    %46 = vector.shape_cast %45 : vector<1xf32> to vector<1x1x1xf32>
    %47 = vector.extract %46[0, 0, 0] : f32 from vector<1x1x1xf32>
    %cst_19 = arith.constant 0.416666657 : f32
    %48 = arith.mulf %47, %cst_19 : f32
    %cst_20 = arith.constant 1.000000e+02 : f32
    %49 = arith.subf %cst_20, %48 : f32
    %c0_21 = arith.constant 0 : index
    %c1 = arith.constant 1 : index
    %50 = memref.load %arg6[%c0_21, %c1] : memref<1x4xf32, #tpu.memory_space<smem>>
    memref.store %49, %arg6[%c0_21, %c1] : memref<1x4xf32, #tpu.memory_space<smem>>
    %c0_22 = arith.constant 0 : index
    %c0_23 = arith.constant 0 : index
    %51 = vector.load %arg4[%c0_22, %c0_23] : memref<120x128xf32, #tpu.memory_space<vmem>>, vector<120x128xf32>
    %c0_24 = arith.constant 0 : index
    %c0_25 = arith.constant 0 : index
    %52 = vector.load %arg5[%c0_24, %c0_25] : memref<120x128xf32, #tpu.memory_space<vmem>>, vector<120x128xf32>
    %53 = arith.subf %51, %52 : vector<120x128xf32>
    %54 = arith.mulf %53, %53 : vector<120x128xf32>
    %55 = vector.shape_cast %54 : vector<120x128xf32> to vector<1x120x128xf32>
    %cst_26 = arith.constant dense<0.000000e+00> : vector<1xf32>
    %56 = vector.multi_reduction <add>, %55, %cst_26 [1, 2] : vector<1x120x128xf32> to vector<1xf32>
    %57 = vector.shape_cast %56 : vector<1xf32> to vector<1x1x1xf32>
    %58 = vector.extract %57[0, 0, 0] : f32 from vector<1x1x1xf32>
    %c0_27 = arith.constant 0 : index
    %c2 = arith.constant 2 : index
    %59 = memref.load %arg6[%c0_27, %c2] : memref<1x4xf32, #tpu.memory_space<smem>>
    memref.store %58, %arg6[%c0_27, %c2] : memref<1x4xf32, #tpu.memory_space<smem>>
    %cst_28 = arith.constant 0.000000e+00 : f32
    %c0_29 = arith.constant 0 : index
    %c3 = arith.constant 3 : index
    %60 = memref.load %arg6[%c0_29, %c3] : memref<1x4xf32, #tpu.memory_space<smem>>
    memref.store %cst_28, %arg6[%c0_29, %c3] : memref<1x4xf32, #tpu.memory_space<smem>>
    return
  }
}

</mosaic_0001>

<llo_original>
// kernel: tpu_custom_call.1
$region0: #{tpu_custom_call.1}
  #allocation0 [shape = 'u32[]', space=smem, size = 0x4, offset = 0x4, fixed_abs, tag = 'smem constant byte address 0x4 - core index']
  #allocation1 [shape = 'u32[144,128]{1,0:T(1,128)}', space=vmem, size = 0x12000, scoped, tag = 'internal scratch']
  %s0 = inlined_call_operand.hbm [shape: f32[9,512], index: 0, kind: input, shape index: {}]
  %s1 = inlined_call_operand.hbm [shape: s32[1,512], index: 1, kind: input, shape index: {}]
  %s2 = inlined_call_operand.hbm [shape: f32[9,256], index: 2, kind: input, shape index: {}]
  %s3 = inlined_call_operand.vmem [shape: s32[1,256], index: 3, kind: input, shape index: {}]
  %s4 = inlined_call_operand.hbm [shape: f32[120,128], index: 4, kind: input, shape index: {}]
  %s5 = inlined_call_operand.hbm [shape: f32[120,128], index: 5, kind: input, shape index: {}]
  %s6 = inlined_call_operand.hbm [shape: f32[1,4], index: 6, kind: output, shape index: {}]
  %s7 = sld [smem:[#allocation0]]
  $region54: #{tpu_custom_call.1} parent=0
    _
  %s9 = ssub.s32 1, %s7
  %s10 = scalar_select 0, %s9, %s7
  $region1: #{tpu_custom_call.1} parent=0
    #allocation2 [shape = 'u8[32768]{0}', space=vmem, size = 0x8000, scoped, tag = 'input window, operand 0, single buffered']
    #allocation3 [shape = 's32[1]{0}', space=sflag, size = 0x4, scoped, tag = 'scoped memory for tpu_custom_call.1']
    #allocation4 [shape = 's32[1]{0}', space=sflag, size = 0x4, scoped, tag = 'scoped memory for tpu_custom_call.1']
    #allocation5 [shape = 'u8[2048]{0}', space=vmem, size = 0x800, scoped, tag = 'input window, operand 1, single buffered']
    #allocation6 [shape = 's32[1]{0}', space=sflag, size = 0x4, scoped, tag = 'scoped memory for tpu_custom_call.1']
    #allocation7 [shape = 'u8[16384]{0}', space=vmem, size = 0x4000, scoped, tag = 'input window, operand 2, single buffered']
    #allocation8 [shape = 'u8[61440]{0}', space=vmem, size = 0xf000, scoped, tag = 'input window, operand 4, single buffered']
    #allocation9 [shape = 's32[1]{0}', space=sflag, size = 0x4, scoped, tag = 'scoped memory for tpu_custom_call.1']
    #allocation10 [shape = 'u8[61440]{0}', space=vmem, size = 0xf000, scoped, tag = 'input window, operand 5, single buffered']
    #allocation11 [shape = 'u8[512]{0}', space=smem, size = 0x200, scoped, tag = 'output window, operand 0, single buffered']
    %11 = vsyncpa [#allocation3], 0
    %12 = vsyncpa [#allocation6], 0
    %13 = vsyncpa [#allocation9], 0
    %14 = vsyncpa [#allocation4], 0
    // Predicated region
    $region2: #{tpu_custom_call.1} parent=1 // pred_check
      _
    $region3: #{tpu_custom_call.1} parent=1 // pred_check_branch
      %16 = sbr.rel (0) target = $region5
    $region4: #{tpu_custom_call.1} parent=1 // pred_region
      %s18 = ssub.s32 1024, 1024
      %19 = vsyncadd [#allocation3], %s18
      %s20 = sshll.u32 [#allocation2], 4
      %s21 = int_to_ptr.vmem [resolvable:$true] %s20
      %26 = dma.hbm_to_vmem [thread:$0]  %s0, 1024, %s21, [#allocation3], 512, 512, 32
    $region5: #{tpu_custom_call.1} parent=1 // pred_fallthru
      _
    // Predicated region
    $region6: #{tpu_custom_call.1} parent=1 // pred_check
      _
    $region7: #{tpu_custom_call.1} parent=1 // pred_check_branch
      %28 = sbr.rel (0) target = $region9
    $region8: #{tpu_custom_call.1} parent=1 // pred_region
      %s30 = ssub.s32 64, 64
      %31 = vsyncadd [#allocation6], %s30
      %s33 = sshll.u32 [#allocation5], 4
      %s34 = int_to_ptr.vmem [resolvable:$true] %s33
      %36 = dma.hbm_to_vmem [thread:$0]  %s1, 64, %s34, [#allocation6]
    $region9: #{tpu_custom_call.1} parent=1 // pred_fallthru
      _
    // Predicated region
    $region10: #{tpu_custom_call.1} parent=1 // pred_check
      _
    $region11: #{tpu_custom_call.1} parent=1 // pred_check_branch
      %38 = sbr.rel (0) target = $region13
    $region12: #{tpu_custom_call.1} parent=1 // pred_region
      %s40 = ssub.s32 512, 512
      %41 = vsyncadd [#allocation6], %s40
      %s42 = sshll.u32 [#allocation7], 4
      %s43 = int_to_ptr.vmem [resolvable:$true] %s42
      %48 = dma.hbm_to_vmem [thread:$0]  %s2, 512, %s43, [#allocation6], 256, 256, 16
    $region13: #{tpu_custom_call.1} parent=1 // pred_fallthru
      _
    // Predicated region
    $region14: #{tpu_custom_call.1} parent=1 // pred_check
      _
    $region15: #{tpu_custom_call.1} parent=1 // pred_check_branch
      %50 = sbr.rel (0) target = $region17
    $region16: #{tpu_custom_call.1} parent=1 // pred_region
      _
    $region17: #{tpu_custom_call.1} parent=1 // pred_fallthru
      _
    // Predicated region
    $region18: #{tpu_custom_call.1} parent=1 // pred_check
      _
    $region19: #{tpu_custom_call.1} parent=1 // pred_check_branch
      %52 = sbr.rel (0) target = $region21
    $region20: #{tpu_custom_call.1} parent=1 // pred_region
      %s54 = ssub.s32 1920, 1920
      %55 = vsyncadd [#allocation9], %s54
      %s56 = sshll.u32 [#allocation8], 4
      %s57 = int_to_ptr.vmem [resolvable:$true] %s56
      %62 = dma.hbm_to_vmem [thread:$0]  %s4, 1920, %s57, [#allocation9], 128, 128, 8
    $region21: #{tpu_custom_call.1} parent=1 // pred_fallthru
      _
    // Predicated region
    $region22: #{tpu_custom_call.1} parent=1 // pred_check
      _
    $region23: #{tpu_custom_call.1} parent=1 // pred_check_branch
      %64 = sbr.rel (0) target = $region25
    $region24: #{tpu_custom_call.1} parent=1 // pred_region
      %s66 = ssub.s32 1920, 1920
      %67 = vsyncadd [#allocation9], %s66
      %s68 = sshll.u32 [#allocation10], 4
      %s69 = int_to_ptr.vmem [resolvable:$true] %s68
      %74 = dma.hbm_to_vmem [thread:$0]  %s5, 1920, %s69, [#allocation9], 128, 128, 8
    $region25: #{tpu_custom_call.1} parent=1 // pred_fallthru
      _
    // Predicated region
    $region26: #{tpu_custom_call.1} parent=1 // pred_check
      _
    $region27: #{tpu_custom_call.1} parent=1 // pred_check_branch
      %76 = sbr.rel (0) target = $region29
    $region28: #{tpu_custom_call.1} parent=1 // pred_region
      %77 = dma.done [#allocation3], 1024
    $region29: #{tpu_custom_call.1} parent=1 // pred_fallthru
      _
    // Predicated region
    $region30: #{tpu_custom_call.1} parent=1 // pred_check
      _
    $region31: #{tpu_custom_call.1} parent=1 // pred_check_branch
      %79 = sbr.rel (0) target = $region33
    $region32: #{tpu_custom_call.1} parent=1 // pred_region
      %80 = dma.done [#allocation6], 64
    $region33: #{tpu_custom_call.1} parent=1 // pred_fallthru
      _
    // Predicated region
    $region34: #{tpu_custom_call.1} parent=1 // pred_check
      _
    $region35: #{tpu_custom_call.1} parent=1 // pred_check_branch
      %82 = sbr.rel (0) target = $region37
    $region36: #{tpu_custom_call.1} parent=1 // pred_region
      %83 = dma.done [#allocation6], 512
    $region37: #{tpu_custom_call.1} parent=1 // pred_fallthru
      _
    // Predicated region
    $region38: #{tpu_custom_call.1} parent=1 // pred_check
      _
    $region39: #{tpu_custom_call.1} parent=1 // pred_check_branch
      %85 = sbr.rel (0) target = $region41
    $region40: #{tpu_custom_call.1} parent=1 // pred_region
      %86 = dma.done [#allocation9], 1920
    $region41: #{tpu_custom_call.1} parent=1 // pred_fallthru
      _
    // Predicated region
    $region42: #{tpu_custom_call.1} parent=1 // pred_check
      _
    $region43: #{tpu_custom_call.1} parent=1 // pred_check_branch
      %88 = sbr.rel (0) target = $region45
    $region44: #{tpu_custom_call.1} parent=1 // pred_region
      %89 = dma.done [#allocation9], 1920
    $region45: #{tpu_custom_call.1} parent=1 // pred_fallthru
      _
    %v90 = vld [vmem:[#allocation2] sm:$0xff]
    %v91 = vld [vmem:[#allocation2 + $0x8] sm:$0xff]
    %v92 = vld [vmem:[#allocation2 + $0x10] sm:$0xff]
    %v93 = vld [vmem:[#allocation2 + $0x18] sm:$0xff]
    %v94 = vld [vmem:[#allocation2 + $0x20] sm:$0x1]
    %v95 = vld [vmem:[#allocation2 + $0x28] sm:$0x1]
    %v96 = vld [vmem:[#allocation2 + $0x30] sm:$0x1]
    %v97 = vld [vmem:[#allocation2 + $0x38] sm:$0x1]
    %v98 = vld [vmem:[#allocation5] sm:$0xf]
    %vm99 = vcmask 1040384
    %v100 = vsel %vm99, %v94, -inf
    %v101 = vmax.f32 %v90, %v100
    %v102 = vrot.slane %v101, 4
    %v103 = vmax.f32 %v101, %v102
    %v104 = vrot.slane %v103, 2
    %v105 = vmax.f32 %v103, %v104
    %v106 = vrot.slane %v105, 1
    %v107 = vmax.f32 %v105, %v106
    %v108 = vsel %vm99, %v95, -inf
    %v109 = vmax.f32 %v91, %v108
    %v110 = vrot.slane %v109, 4
    %v111 = vmax.f32 %v109, %v110
    %v112 = vrot.slane %v111, 2
    %v113 = vmax.f32 %v111, %v112
    %v114 = vrot.slane %v113, 1
    %v115 = vmax.f32 %v113, %v114
    %v116 = vsel %vm99, %v96, -inf
    %v117 = vmax.f32 %v92, %v116
    %v118 = vrot.slane %v117, 4
    %v119 = vmax.f32 %v117, %v118
    %v120 = vrot.slane %v119, 2
    %v121 = vmax.f32 %v119, %v120
    %v122 = vrot.slane %v121, 1
    %v123 = vmax.f32 %v121, %v122
    %v124 = vsel %vm99, %v97, -inf
    %v125 = vmax.f32 %v93, %v124
    %v126 = vrot.slane %v125, 4
    %v127 = vmax.f32 %v125, %v126
    %v128 = vrot.slane %v127, 2
    %v129 = vmax.f32 %v127, %v128
    %v130 = vrot.slane %v129, 1
    %v131 = vmax.f32 %v129, %v130
    %v132 = vsub.f32 %v90, %v107
    %v133 = vsub.f32 %v91, %v115
    %v134 = vsub.f32 %v92, %v123
    %v135 = vsub.f32 %v93, %v131
    %v136 = vsub.f32 %v94, %v107
    %v137 = vsub.f32 %v95, %v115
    %v138 = vsub.f32 %v96, %v123
    %v139 = vsub.f32 %v97, %v131
    %v140 = vmul.f32 %v132, 1.442695
    %v141 = vpow.pop %v140
    %v142 = vmul.f32 %v133, 1.442695
    %v143 = vpow.pop %v142
    %v144 = vmul.f32 %v134, 1.442695
    %v145 = vpow.pop %v144
    %v146 = vmul.f32 %v135, 1.442695
    %v147 = vpow.pop %v146
    %v148 = vmul.f32 %v136, 1.442695
    %v149 = vpow.pop %v148
    %v150 = vmul.f32 %v137, 1.442695
    %v151 = vpow.pop %v150
    %v152 = vmul.f32 %v138, 1.442695
    %v153 = vpow.pop %v152
    %v154 = vmul.f32 %v139, 1.442695
    %v155 = vpow.pop %v154
    %v156 = vsel %vm99, %v149, 0.0
    %v157 = vadd.f32 %v141, %v156
    %v158 = vrot.slane %v157, 4
    %v159 = vadd.f32 %v157, %v158
    %v160 = vrot.slane %v159, 2
    %v161 = vadd.f32 %v159, %v160
    %v162 = vrot.slane %v161, 1
    %v163 = vadd.f32 %v161, %v162
    %v164 = vsel %vm99, %v151, 0.0
    %v165 = vadd.f32 %v143, %v164
    %v166 = vrot.slane %v165, 4
    %v167 = vadd.f32 %v165, %v166
    %v168 = vrot.slane %v167, 2
    %v169 = vadd.f32 %v167, %v168
    %v170 = vrot.slane %v169, 1
    %v171 = vadd.f32 %v169, %v170
    %v172 = vsel %vm99, %v153, 0.0
    %v173 = vadd.f32 %v145, %v172
    %v174 = vrot.slane %v173, 4
    %v175 = vadd.f32 %v173, %v174
    %v176 = vrot.slane %v175, 2
    %v177 = vadd.f32 %v175, %v176
    %v178 = vrot.slane %v177, 1
    %v179 = vadd.f32 %v177, %v178
    %v180 = vsel %vm99, %v155, 0.0
    %v181 = vadd.f32 %v147, %v180
    %v182 = vrot.slane %v181, 4
    %v183 = vadd.f32 %v181, %v182
    %v184 = vrot.slane %v183, 2
    %v185 = vadd.f32 %v183, %v184
    %v186 = vrot.slane %v185, 1
    %v187 = vadd.f32 %v185, %v186
    %v188 = vlog2.pop %v163
    %v189 = vmul.f32 %v188, 0.6931472
    %v190 = vlog2.pop %v171
    %v191 = vmul.f32 %v190, 0.6931472
    %v192 = vlog2.pop %v179
    %v193 = vmul.f32 %v192, 0.6931472
    %v194 = vlog2.pop %v187
    %v195 = vmul.f32 %v194, 0.6931472
    %v196 = vlaneseq
    %v197 = vshrl.u32 %v196, 7
    %v198 = vadd.s32 %v197, 8
    %v199 = vlaneseq
    %v200 = vshrl.u32 %v199, 7
    %v201 = vsub.s32 0, %v200
    %v202 = vrot.slane %v98, %v201
    %v203 = vlaneseq
    %v204 = vshrl.u32 %v203, 7
    %v205 = vsub.s32 1, %v204
    %v206 = vrot.slane %v98, %v205
    %v207 = vlaneseq
    %v208 = vshrl.u32 %v207, 7
    %v209 = vsub.s32 2, %v208
    %v210 = vrot.slane %v98, %v209
    %v211 = vlaneseq
    %v212 = vshrl.u32 %v211, 7
    %v213 = vsub.s32 3, %v212
    %v214 = vrot.slane %v98, %v213
    %vm215 = vcmp.eq.s32.totalorder %v197, %v202
    %vm216 = vcmp.eq.s32.totalorder %v197, %v206
    %vm217 = vcmp.eq.s32.totalorder %v197, %v210
    %vm218 = vcmp.eq.s32.totalorder %v197, %v214
    %vm219 = vcmp.eq.s32.totalorder %v198, %v202
    %vm220 = vcmp.eq.s32.totalorder %v198, %v206
    %vm221 = vcmp.eq.s32.totalorder %v198, %v210
    %vm222 = vcmp.eq.s32.totalorder %v198, %v214
    %v223 = vsel %vm215, %v132, 0.0
    %v224 = vsel %vm216, %v133, 0.0
    %v225 = vsel %vm217, %v134, 0.0
    %v226 = vsel %vm218, %v135, 0.0
    %v227 = vsel %vm219, %v136, 0.0
    %v228 = vsel %vm220, %v137, 0.0
    %v229 = vsel %vm221, %v138, 0.0
    %v230 = vsel %vm222, %v139, 0.0
    %v231 = vsel %vm99, %v227, 0.0
    %v232 = vadd.f32 %v223, %v231
    %v233 = vrot.slane %v232, 4
    %v234 = vadd.f32 %v232, %v233
    %v235 = vrot.slane %v234, 2
    %v236 = vadd.f32 %v234, %v235
    %v237 = vrot.slane %v236, 1
    %v238 = vadd.f32 %v236, %v237
    %v239 = vsel %vm99, %v228, 0.0
    %v240 = vadd.f32 %v224, %v239
    %v241 = vrot.slane %v240, 4
    %v242 = vadd.f32 %v240, %v241
    %v243 = vrot.slane %v242, 2
    %v244 = vadd.f32 %v242, %v243
    %v245 = vrot.slane %v244, 1
    %v246 = vadd.f32 %v244, %v245
    %v247 = vsel %vm99, %v229, 0.0
    %v248 = vadd.f32 %v225, %v247
    %v249 = vrot.slane %v248, 4
    %v250 = vadd.f32 %v248, %v249
    %v251 = vrot.slane %v250, 2
    %v252 = vadd.f32 %v250, %v251
    %v253 = vrot.slane %v252, 1
    %v254 = vadd.f32 %v252, %v253
    %v255 = vsel %vm99, %v230, 0.0
    %v256 = vadd.f32 %v226, %v255
    %v257 = vrot.slane %v256, 4
    %v258 = vadd.f32 %v256, %v257
    %v259 = vrot.slane %v258, 2
    %v260 = vadd.f32 %v258, %v259
    %v261 = vrot.slane %v260, 1
    %v262 = vadd.f32 %v260, %v261
    %vm263 = vcmp.ge.s32.totalorder %v98, 0
    %v264 = vsel %vm263, 1, 0
    %v265 = vcvt.s32.f32 %v264
    %v266 = vsub.f32 %v189, %v238
    %v267 = vsub.f32 %v191, %v246
    %v268 = vsub.f32 %v193, %v254
    %v269 = vsub.f32 %v195, %v262
    %v271 = vlaneseq
    %v272 = vshrl.u32 %v271, 7
    %v273 = vsub.s32 0, %v272
    %v274 = vrot.slane %v265, %v273
    %v275 = vlaneseq
    %v276 = vshrl.u32 %v275, 7
    %v277 = vsub.s32 1, %v276
    %v278 = vrot.slane %v265, %v277
    %v279 = vlaneseq
    %v280 = vshrl.u32 %v279, 7
    %v281 = vsub.s32 2, %v280
    %v282 = vrot.slane %v265, %v281
    %v283 = vlaneseq
    %v284 = vshrl.u32 %v283, 7
    %v285 = vsub.s32 3, %v284
    %v286 = vrot.slane %v265, %v285
    %v291 = vmul.f32 %v266, %v274
    %v292 = vmul.f32 %v267, %v278
    %v293 = vmul.f32 %v268, %v282
    %v294 = vmul.f32 %v269, %v286
    %v295 = vsel %vm99, %v291, 0.0
    %v296 = vsel %vm99, %v292, 0.0
    %v297 = vadd.f32 %v295, %v296
    %v298 = vsel %vm99, %v293, 0.0
    %v299 = vadd.f32 %v297, %v298
    %v300 = vsel %vm99, %v294, 0.0
    %v301 = vadd.f32 %v299, %v300
    %302 = vadd.xlane.f32.xlu0 %v301
    %v303 = vpop.xlane.xlu0 %302
    %v304 = vrot.slane %v303, 4
    %v305 = vadd.f32 %v303, %v304
    %v306 = vrot.slane %v305, 2
    %v307 = vadd.f32 %v305, %v306
    %v308 = vrot.slane %v307, 1
    %v309 = vadd.f32 %v307, %v308
    %s310 = vtos %v309
    %s311 = smul.f32 %s310, 0.0020833334
    %s312 = scalar_lea.smem [#allocation11], 0
    %313 = sst [smem:[%s312]] %s311
    %v314 = vld [vmem:[#allocation7] sm:$0xff]
    %v315 = vld [vmem:[#allocation7 + $0x8] sm:$0xff]
    %v316 = vld [vmem:[#allocation7 + $0x10] sm:$0x1]
    %v317 = vld [vmem:[#allocation7 + $0x18] sm:$0x1]
    %v318 = vld [vmem:[%s3] sm:$0x3]
    %v319 = vsel %vm99, %v316, -inf
    %v320 = vmax.f32 %v314, %v319
    %v321 = vrot.slane %v320, 4
    %v322 = vmax.f32 %v320, %v321
    %v323 = vrot.slane %v322, 2
    %v324 = vmax.f32 %v322, %v323
    %v325 = vrot.slane %v324, 1
    %v326 = vmax.f32 %v324, %v325
    %v327 = vsel %vm99, %v317, -inf
    %v328 = vmax.f32 %v315, %v327
    %v329 = vrot.slane %v328, 4
    %v330 = vmax.f32 %v328, %v329
    %v331 = vrot.slane %v330, 2
    %v332 = vmax.f32 %v330, %v331
    %v333 = vrot.slane %v332, 1
    %v334 = vmax.f32 %v332, %v333
    %vm335 = vcmp.eq.f32.partialorder %v314, %v326
    %vm336 = vcmp.eq.f32.partialorder %v315, %v334
    %vm337 = vcmp.eq.f32.partialorder %v316, %v326
    %vm338 = vcmp.eq.f32.partialorder %v317, %v334
    %v339 = vsel %vm335, %v197, 9
    %v340 = vsel %vm336, %v197, 9
    %v341 = vsel %vm337, %v198, 9
    %v342 = vsel %vm338, %v198, 9
    %v343 = vsel %vm99, %v341, 2147483647
    %vm344 = vcmp.lt.s32.totalorder %v339, %v343
    %v345 = vsel %vm344, %v339, %v343
    %v346 = vrot.slane %v345, 4
    %vm347 = vcmp.lt.s32.totalorder %v345, %v346
    %v348 = vsel %vm347, %v345, %v346
    %v349 = vrot.slane %v348, 2
    %vm350 = vcmp.lt.s32.totalorder %v348, %v349
    %v351 = vsel %vm350, %v348, %v349
    %v352 = vrot.slane %v351, 1
    %vm353 = vcmp.lt.s32.totalorder %v351, %v352
    %v354 = vsel %vm353, %v351, %v352
    %v355 = vsel %vm99, %v342, 2147483647
    %vm356 = vcmp.lt.s32.totalorder %v340, %v355
    %v357 = vsel %vm356, %v340, %v355
    %v358 = vrot.slane %v357, 4
    %vm359 = vcmp.lt.s32.totalorder %v357, %v358
    %v360 = vsel %vm359, %v357, %v358
    %v361 = vrot.slane %v360, 2
    %vm362 = vcmp.lt.s32.totalorder %v360, %v361
    %v363 = vsel %vm362, %v360, %v361
    %v364 = vrot.slane %v363, 1
    %vm365 = vcmp.lt.s32.totalorder %v363, %v364
    %v366 = vsel %vm365, %v363, %v364
    %v367 = vlaneseq
    %v368 = vshrl.u32 %v367, 7
    %v369 = vsub.s32 0, %v368
    %v370 = vrot.slane %v318, %v369
    %v371 = vlaneseq
    %v372 = vshrl.u32 %v371, 7
    %v373 = vsub.s32 1, %v372
    %v374 = vrot.slane %v318, %v373
    %vm375 = vcmp.eq.s32.totalorder %v354, %v370
    %vm376 = vcmp.eq.s32.totalorder %v366, %v374
    %v377 = vsel %vm375, 1.0, 0.0
    %v378 = vsel %vm376, 1.0, 0.0
    %v379 = vsel %vm99, %v377, 0.0
    %v380 = vsel %vm99, %v378, 0.0
    %v381 = vadd.f32 %v379, %v380
    %382 = vadd.xlane.f32.xlu0 %v381
    %v383 = vpop.xlane.xlu0 %382
    %v384 = vrot.slane %v383, 4
    %v385 = vadd.f32 %v383, %v384
    %v386 = vrot.slane %v385, 2
    %v387 = vadd.f32 %v385, %v386
    %v388 = vrot.slane %v387, 1
    %v389 = vadd.f32 %v387, %v388
    %s390 = vtos %v389
    %s391 = smul.f32 %s390, 0.41666666
    %s392 = ssub.f32 100.0, %s391
    %s393 = scalar_lea.smem [#allocation11], 1
    %394 = sst [smem:[%s393]] %s392
    %v395 = vld [vmem:[#allocation8] sm:$0xff]
    %v396 = vld [vmem:[#allocation8 + $0x8] sm:$0xff]
    %v397 = vld [vmem:[#allocation8 + $0x10] sm:$0xff]
    %v398 = vld [vmem:[#allocation8 + $0x18] sm:$0xff]
    %v399 = vld [vmem:[#allocation8 + $0x20] sm:$0xff]
    %v400 = vld [vmem:[#allocation8 + $0x28] sm:$0xff]
    %v401 = vld [vmem:[#allocation8 + $0x30] sm:$0xff]
    %v402 = vld [vmem:[#allocation8 + $0x38] sm:$0xff]
    %v403 = vld [vmem:[#allocation8 + $0x40] sm:$0xff]
    %v404 = vld [vmem:[#allocation8 + $0x48] sm:$0xff]
    %v405 = vld [vmem:[#allocation8 + $0x50] sm:$0xff]
    %v406 = vld [vmem:[#allocation8 + $0x58] sm:$0xff]
    %v407 = vld [vmem:[#allocation8 + $0x60] sm:$0xff]
    %v408 = vld [vmem:[#allocation8 + $0x68] sm:$0xff]
    %v409 = vld [vmem:[#allocation8 + $0x70] sm:$0xff]
    %v410 = vld [vmem:[#allocation10] sm:$0xff]
    %v411 = vld [vmem:[#allocation10 + $0x8] sm:$0xff]
    %v412 = vld [vmem:[#allocation10 + $0x10] sm:$0xff]
    %v413 = vld [vmem:[#allocation10 + $0x18] sm:$0xff]
    %v414 = vld [vmem:[#allocation10 + $0x20] sm:$0xff]
    %v415 = vld [vmem:[#allocation10 + $0x28] sm:$0xff]
    %v416 = vld [vmem:[#allocation10 + $0x30] sm:$0xff]
    %v417 = vld [vmem:[#allocation10 + $0x38] sm:$0xff]
    %v418 = vld [vmem:[#allocation10 + $0x40] sm:$0xff]
    %v419 = vld [vmem:[#allocation10 + $0x48] sm:$0xff]
    %v420 = vld [vmem:[#allocation10 + $0x50] sm:$0xff]
    %v421 = vld [vmem:[#allocation10 + $0x58] sm:$0xff]
    %v422 = vld [vmem:[#allocation10 + $0x60] sm:$0xff]
    %v423 = vld [vmem:[#allocation10 + $0x68] sm:$0xff]
    %v424 = vld [vmem:[#allocation10 + $0x70] sm:$0xff]
    %v425 = vsub.f32 %v395, %v410
    %v426 = vsub.f32 %v396, %v411
    %v427 = vsub.f32 %v397, %v412
    %v428 = vsub.f32 %v398, %v413
    %v429 = vsub.f32 %v399, %v414
    %v430 = vsub.f32 %v400, %v415
    %v431 = vsub.f32 %v401, %v416
    %v432 = vsub.f32 %v402, %v417
    %v433 = vsub.f32 %v403, %v418
    %v434 = vsub.f32 %v404, %v419
    %v435 = vsub.f32 %v405, %v420
    %v436 = vsub.f32 %v406, %v421
    %v437 = vsub.f32 %v407, %v422
    %v438 = vsub.f32 %v408, %v423
    %v439 = vsub.f32 %v409, %v424
    %v440 = vmul.f32 %v425, %v425
    %v441 = vmul.f32 %v426, %v426
    %v442 = vmul.f32 %v427, %v427
    %v443 = vmul.f32 %v428, %v428
    %v444 = vmul.f32 %v429, %v429
    %v445 = vmul.f32 %v430, %v430
    %v446 = vmul.f32 %v431, %v431
    %v447 = vmul.f32 %v432, %v432
    %v448 = vmul.f32 %v433, %v433
    %v449 = vmul.f32 %v434, %v434
    %v450 = vmul.f32 %v435, %v435
    %v451 = vmul.f32 %v436, %v436
    %v452 = vmul.f32 %v437, %v437
    %v453 = vmul.f32 %v438, %v438
    %v454 = vmul.f32 %v439, %v439
    %v455 = vadd.f32 %v440, %v441
    %v456 = vadd.f32 %v455, %v442
    %v457 = vadd.f32 %v456, %v443
    %v458 = vadd.f32 %v457, %v444
    %v459 = vadd.f32 %v458, %v445
    %v460 = vadd.f32 %v459, %v446
    %v461 = vadd.f32 %v460, %v447
    %v462 = vadd.f32 %v461, %v448
    %v463 = vadd.f32 %v462, %v449
    %v464 = vadd.f32 %v463, %v450
    %v465 = vadd.f32 %v464, %v451
    %v466 = vadd.f32 %v465, %v452
    %v467 = vadd.f32 %v466, %v453
    %v468 = vadd.f32 %v467, %v454
    %469 = vadd.xlane.f32.xlu0 %v468
    %v470 = vpop.xlane.xlu0 %469
    %v471 = vrot.slane %v470, 4
    %v472 = vadd.f32 %v470, %v471
    %v473 = vrot.slane %v472, 2
    %v474 = vadd.f32 %v472, %v473
    %v475 = vrot.slane %v474, 1
    %v476 = vadd.f32 %v474, %v475
    %s477 = vtos %v476
    %s478 = scalar_lea.smem [#allocation11], 2
    %479 = sst [smem:[%s478]] %s477
    %s480 = scalar_lea.smem [#allocation11], 3
    %481 = sst [smem:[%s480]] 0.0
    // Predicated region
    $region46: #{tpu_custom_call.1} parent=1 // pred_check
      _
    $region47: #{tpu_custom_call.1} parent=1 // pred_check_branch
      %483 = sbr.rel (0) target = $region49
    $region48: #{tpu_custom_call.1} parent=1 // pred_region
      %s485 = ssub.s32 16, 16
      %486 = vsyncadd [#allocation4], %s485
      %489 = dma.smem_to_hbm [#allocation11], 16, %s6, [#allocation4]
    $region49: #{tpu_custom_call.1} parent=1 // pred_fallthru
      _
    // Predicated region
    $region50: #{tpu_custom_call.1} parent=1 // pred_check
      _
    $region51: #{tpu_custom_call.1} parent=1 // pred_check_branch
      %491 = sbr.rel (0) target = $region53
    $region52: #{tpu_custom_call.1} parent=1 // pred_region
      %492 = dma.done [#allocation4], 16
    $region53: #{tpu_custom_call.1} parent=1 // pred_fallthru
      _
    %493 = sfence
    %494 = vsyncpa [#allocation3], 1
    %495 = vsyncpa [#allocation6], 1
    %496 = vsyncpa [#allocation9], 1
    %497 = vsyncpa [#allocation4], 1

</llo_original>
